<compile_context>
chip_gen: v7x
topology: tpu7x:2x2x1
jax: 0.10.0
libtpu: 0.0.40
codegen_flags: <defaults>
</compile_context>

<pallas_src>
import functools

import jax
import jax.numpy as jnp
from jax.experimental import pallas as pl
from jax.experimental.pallas import tpu as pltpu

NUM_GROUPS = 8
EPS = 1e-5  # PyTorch GroupNorm default


def _edge_block_kernel(x_ref, w_ref, mask_ref, gamma_ref, beta_ref, o_ref, *,
                       wp, hw_valid, num_groups, eps):
    # x_ref:     (C_in, L_in)      f32 zero-padded, flattened image (one sample)
    # w_ref:     (C_out, 9*C_in)   bf16, columns tap-major: col = (kh*3+kw)*C_in + ci
    # mask_ref:  (1, L_out)        1.0 on real output pixels, 0.0 elsewhere
    # gamma_ref: (C_out, 1)        GroupNorm affine scale (f32)
    # beta_ref:  (C_out, 1)        GroupNorm affine shift (f32)
    # o_ref:     (C_out, L_out)    padded flattened output (cropped by the wrapper)
    c_out, l_out = o_ref.shape
    gsz = c_out // num_groups

    # --- im2col: stack the 9 statically lane-shifted windows along sublanes ---
    # (f32 pieces of C_in=8 rows => whole (8,128) tiles => tile-aligned concat)
    taps = []
    for kh in range(3):
        for kw in range(3):
            off = kh * wp + kw                           # static lane offset of this tap
            taps.append(x_ref[:, off:off + l_out])       # (C_in, L_out) f32
    xstack = jnp.concatenate(taps, axis=0).astype(jnp.bfloat16)   # (9*C_in, L_out) bf16

    # --- 3x3 conv: ONE fused K=9*C_in bf16 MXU matmul, f32 accumulate ---
    acc = jnp.dot(w_ref[...], xstack,
                  preferred_element_type=jnp.float32)    # (C_out, L_out) f32

    # --- GroupNorm(8): one-pass masked stats reduced along lanes ---
    mask = mask_ref[...]                                 # (1, L_out) f32 (0/1)
    ym = acc * mask                                      # zero out border/tail lanes
    col_sum = jnp.sum(ym, axis=1, keepdims=True)         # (C_out, 1)
    col_ssq = jnp.sum(ym * ym, axis=1, keepdims=True)    # (C_out, 1)

    inv_cnt = 1.0 / float(gsz * hw_valid)
    grp_sum = jnp.sum(col_sum.reshape(num_groups, gsz, 1), axis=1, keepdims=True)
    grp_ssq = jnp.sum(col_ssq.reshape(num_groups, gsz, 1), axis=1, keepdims=True)
    mean_g = grp_sum * inv_cnt                           # (G, 1, 1)
    var_g = jnp.maximum(grp_ssq * inv_cnt - mean_g * mean_g, 0.0)
    inv_g = jax.lax.rsqrt(var_g + eps)                   # (G, 1, 1)

    mean_c = jnp.broadcast_to(mean_g, (num_groups, gsz, 1)).reshape(c_out, 1)
    inv_c = jnp.broadcast_to(inv_g, (num_groups, gsz, 1)).reshape(c_out, 1)

    # fold normalization + affine into one per-channel scale/shift, then FMA + ReLU
    scale = gamma_ref[...] * inv_c                       # (C_out, 1)
    shift = beta_ref[...] - mean_c * scale
    o_ref[...] = jnp.maximum(acc * scale + shift, 0.0).astype(o_ref.dtype)


def edge_block_forward(x, gc, w, gamma, beta):
    """edge_Block.forward: ReLU(GroupNorm8(Conv3x3_pad1(x))).  `gc` is ignored (as in PyTorch)."""
    del gc  # unused by the PyTorch forward
    N, C_in, H, W = x.shape
    C_out = w.shape[0]
    assert w.shape == (C_out, C_in, 3, 3)
    assert C_out % NUM_GROUPS == 0, "GroupNorm(8, C_out) requires C_out % 8 == 0"

    Wp = W + 2                                     # padded image width
    max_off = 2 * Wp + 2                           # largest tap lane offset
    L_out = 128 * pl.cdiv(H * Wp, 128)             # lane-dense output width (mult of 128)
    L_need = L_out + max_off                       # every tap slice must stay in-bounds
    R = max(H + 2, pl.cdiv(L_need, Wp))            # total rows of the padded image
    L_in = R * Wp

    # SINGLE host-side pad: conv padding ring + extra bottom rows so the flattened
    # lane axis covers every shifted tap window (no separate halo/round-up pad).
    xb = jnp.pad(x, ((0, 0), (0, 0), (1, R - H - 1), (1, 1))).reshape(N, C_in, L_in)

    # 3x3 weights flattened tap-major: w_flat[co, (kh*3+kw)*C_in + ci] = w[co, ci, kh, kw]
    w_flat = jnp.transpose(w, (0, 2, 3, 1)).reshape(C_out, 9 * C_in).astype(jnp.bfloat16)

    # validity mask over the output lanes: lane l = i*Wp + j is real iff i < H, j < W
    m = jnp.zeros((R, Wp), jnp.float32).at[:H, :W].set(1.0).reshape(L_in)
    mask = m[:L_out].reshape(1, L_out)

    kernel = functools.partial(_edge_block_kernel, wp=Wp, hw_valid=H * W,
                               num_groups=NUM_GROUPS, eps=EPS)

    out_flat = pl.pallas_call(
        kernel,
        out_shape=jax.ShapeDtypeStruct((N, C_out, L_out), x.dtype),
        grid_spec=pltpu.PrefetchScalarGridSpec(
            num_scalar_prefetch=0,
            grid=(N,),
            in_specs=[
                pl.BlockSpec((None, C_in, L_in), lambda b: (b, 0, 0)),   # x (batch squeezed)
                pl.BlockSpec((C_out, 9 * C_in), lambda b: (0, 0)),       # fused bf16 weights
                pl.BlockSpec((1, L_out), lambda b: (0, 0)),              # mask (resident)
                pl.BlockSpec((C_out, 1), lambda b: (0, 0)),              # gamma
                pl.BlockSpec((C_out, 1), lambda b: (0, 0)),              # beta
            ],
            out_specs=pl.BlockSpec((None, C_out, L_out), lambda b: (b, 0, 0)),
        ),
        compiler_params=pltpu.CompilerParams(
            dimension_semantics=("parallel",),      # one sample per step -> 2 TCs on v7x
            vmem_limit_bytes=32 * 1024 * 1024,
        ),
    )(xb, w_flat, mask,
      gamma.reshape(C_out, 1).astype(jnp.float32),
      beta.reshape(C_out, 1).astype(jnp.float32))

    # crop the padded lane axis back to (H, W): output pixel (i, j) lives at lane i*Wp + j
    out = out_flat[:, :, :H * Wp].reshape(N, C_out, H, Wp)[:, :, :, :W]
    return out


def _reference(x, w, gamma, beta):
    # pure-JAX reference of the PyTorch forward (NCHW); inputs rounded to bf16 to match
    # the kernel's bf16 MXU matmul (accumulation and GroupNorm stay f32).
    N, C_in, H, W = x.shape
    C_out = w.shape[0]
    xr = x.astype(jnp.bfloat16).astype(jnp.float32)
    wr = w.astype(jnp.bfloat16).astype(jnp.float32)
    xp = jnp.pad(xr, ((0, 0), (0, 0), (1, 1), (1, 1)))
    y = jnp.zeros((N, C_out, H, W), jnp.float32)
    for kh in range(3):
        for kw in range(3):
            y = y + jnp.einsum("oi,nihw->nohw", wr[:, :, kh, kw],
                               xp[:, :, kh:kh + H, kw:kw + W])
    gsz = C_out // NUM_GROUPS
    yg = y.reshape(N, NUM_GROUPS, gsz, H, W)
    mean = jnp.mean(yg, axis=(2, 3, 4), keepdims=True)
    var = jnp.mean((yg - mean) ** 2, axis=(2, 3, 4), keepdims=True)
    yn = ((yg - mean) * jax.lax.rsqrt(var + EPS)).reshape(N, C_out, H, W)
    out = yn * gamma.reshape(1, C_out, 1, 1) + beta.reshape(1, C_out, 1, 1)
    return jnp.maximum(out, 0.0)


if __name__ == "__main__":
    # edge_Block(in_channel=8, out_channel=16): out_channel must be divisible by 8 groups
    N, C_in, C_out, H, W = 2, 8, 16, 16, 16

    key = jax.random.PRNGKey(0)
    k_x, k_gc, k_w, k_ga, k_b = jax.random.split(key, 5)

    x = jax.random.normal(k_x, (N, C_in, H, W), dtype=jnp.float32)
    gc = jax.random.normal(k_gc, (N, C_in, H, W), dtype=jnp.float32)   # ignored by forward
    # Conv2d(C_in, C_out, 3, padding=1, bias=False) weight: (C_out, C_in, 3, 3)
    w = 0.1 * jax.random.normal(k_w, (C_out, C_in, 3, 3), dtype=jnp.float32)
    gamma = 1.0 + 0.05 * jax.random.normal(k_ga, (C_out,), dtype=jnp.float32)
    beta = 0.05 * jax.random.normal(k_b, (C_out,), dtype=jnp.float32)

    out = edge_block_forward(x, gc, w, gamma, beta)
    out = jax.block_until_ready(out)

    ref = _reference(x, w, gamma, beta)
    assert out.shape == (N, C_out, H, W)
    err = float(jnp.max(jnp.abs(out - ref)))
    assert jnp.allclose(out, ref, atol=2e-3, rtol=2e-3), f"max abs err = {err}"

    print("KERNEL_OK")
</pallas_src>

<mosaic_0001>
module attributes {stable_mosaic.version = 11 : i64} {
  func.func @_edge_block_kernel(%arg0: i32, %arg1: memref<1x8x432xf32, #tpu.memory_space<vmem>>, %arg2: memref<16x72xbf16, #tpu.memory_space<vmem>>, %arg3: memref<1x384xf32, #tpu.memory_space<vmem>>, %arg4: memref<16x1xf32, #tpu.memory_space<vmem>>, %arg5: memref<16x1xf32, #tpu.memory_space<vmem>>, %arg6: memref<1x16x384xf32, #tpu.memory_space<vmem>>) attributes {dimension_semantics = [#tpu.dimension_semantics<parallel>], iteration_bounds = array<i64: 2>, scalar_prefetch = 0 : i64, scratch_operands = 0 : i64, tpu.core_type = #tpu.core_type<tc>, window_params = [{transform_indices = @transform_0, window_bounds = array<i64: 1, 8, 432>}, {pipeline_mode = #tpu.pipeline_mode<synchronous>, transform_indices = @transform_1, window_bounds = array<i64: 16, 72>}, {pipeline_mode = #tpu.pipeline_mode<synchronous>, transform_indices = @transform_2, window_bounds = array<i64: 1, 384>}, {pipeline_mode = #tpu.pipeline_mode<synchronous>, transform_indices = @transform_3, window_bounds = array<i64: 16, 1>}, {pipeline_mode = #tpu.pipeline_mode<synchronous>, transform_indices = @transform_4, window_bounds = array<i64: 16, 1>}, {transform_indices = @transform_5, window_bounds = array<i64: 1, 16, 384>}]} {
    %c0 = arith.constant 0 : index
    %c0_0 = arith.constant 0 : index
    %c0_1 = arith.constant 0 : index
    %0 = vector.load %arg1[%c0, %c0_0, %c0_1] : memref<1x8x432xf32, #tpu.memory_space<vmem>>, vector<1x8x384xf32>
    %1 = vector.shape_cast %0 : vector<1x8x384xf32> to vector<8x384xf32>
    %c0_2 = arith.constant 0 : index
    %c0_3 = arith.constant 0 : index
    %c1 = arith.constant 1 : index
    %2 = vector.load %arg1[%c0_2, %c0_3, %c1] : memref<1x8x432xf32, #tpu.memory_space<vmem>>, vector<1x8x384xf32>
    %3 = vector.shape_cast %2 : vector<1x8x384xf32> to vector<8x384xf32>
    %c0_4 = arith.constant 0 : index
    %c0_5 = arith.constant 0 : index
    %c2 = arith.constant 2 : index
    %4 = vector.load %arg1[%c0_4, %c0_5, %c2] : memref<1x8x432xf32, #tpu.memory_space<vmem>>, vector<1x8x384xf32>
    %5 = vector.shape_cast %4 : vector<1x8x384xf32> to vector<8x384xf32>
    %c0_6 = arith.constant 0 : index
    %c0_7 = arith.constant 0 : index
    %c18 = arith.constant 18 : index
    %6 = vector.load %arg1[%c0_6, %c0_7, %c18] : memref<1x8x432xf32, #tpu.memory_space<vmem>>, vector<1x8x384xf32>
    %7 = vector.shape_cast %6 : vector<1x8x384xf32> to vector<8x384xf32>
    %c0_8 = arith.constant 0 : index
    %c0_9 = arith.constant 0 : index
    %c19 = arith.constant 19 : index
    %8 = vector.load %arg1[%c0_8, %c0_9, %c19] : memref<1x8x432xf32, #tpu.memory_space<vmem>>, vector<1x8x384xf32>
    %9 = vector.shape_cast %8 : vector<1x8x384xf32> to vector<8x384xf32>
    %c0_10 = arith.constant 0 : index
    %c0_11 = arith.constant 0 : index
    %c20 = arith.constant 20 : index
    %10 = vector.load %arg1[%c0_10, %c0_11, %c20] : memref<1x8x432xf32, #tpu.memory_space<vmem>>, vector<1x8x384xf32>
    %11 = vector.shape_cast %10 : vector<1x8x384xf32> to vector<8x384xf32>
    %c0_12 = arith.constant 0 : index
    %c0_13 = arith.constant 0 : index
    %c36 = arith.constant 36 : index
    %12 = vector.load %arg1[%c0_12, %c0_13, %c36] : memref<1x8x432xf32, #tpu.memory_space<vmem>>, vector<1x8x384xf32>
    %13 = vector.shape_cast %12 : vector<1x8x384xf32> to vector<8x384xf32>
    %c0_14 = arith.constant 0 : index
    %c0_15 = arith.constant 0 : index
    %c37 = arith.constant 37 : index
    %14 = vector.load %arg1[%c0_14, %c0_15, %c37] : memref<1x8x432xf32, #tpu.memory_space<vmem>>, vector<1x8x384xf32>
    %15 = vector.shape_cast %14 : vector<1x8x384xf32> to vector<8x384xf32>
    %c0_16 = arith.constant 0 : index
    %c0_17 = arith.constant 0 : index
    %c38 = arith.constant 38 : index
    %16 = vector.load %arg1[%c0_16, %c0_17, %c38] : memref<1x8x432xf32, #tpu.memory_space<vmem>>, vector<1x8x384xf32>
    %17 = vector.shape_cast %16 : vector<1x8x384xf32> to vector<8x384xf32>
    %18 = tpu.concatenate %1, %3, %5, %7, %9, %11, %13, %15, %17 in 0 : vector<8x384xf32>, vector<8x384xf32>, vector<8x384xf32>, vector<8x384xf32>, vector<8x384xf32>, vector<8x384xf32>, vector<8x384xf32>, vector<8x384xf32>, vector<8x384xf32> -> vector<72x384xf32>
    %19 = arith.truncf %18 : vector<72x384xf32> to vector<72x384xbf16>
    %c0_18 = arith.constant 0 : index
    %c0_19 = arith.constant 0 : index
    %20 = vector.load %arg2[%c0_18, %c0_19] : memref<16x72xbf16, #tpu.memory_space<vmem>>, vector<16x72xbf16>
    %cst = arith.constant dense<0.000000e+00> : vector<16x384xf32>
    %21 = tpu.matmul %20, %19, %cst {dimension_numbers = #tpu.dot_dimension_numbers<[1], [0], [0], [1], [0, 0, 1, 1], [], []>} : vector<16x72xbf16>, vector<72x384xbf16>, vector<16x384xf32> -> vector<16x384xf32>
    %c0_20 = arith.constant 0 : index
    %c0_21 = arith.constant 0 : index
    %22 = vector.load %arg3[%c0_20, %c0_21] : memref<1x384xf32, #tpu.memory_space<vmem>>, vector<1x384xf32>
    %23 = vector.broadcast %22 : vector<1x384xf32> to vector<16x384xf32>
    %24 = arith.mulf %21, %23 : vector<16x384xf32>
    %cst_22 = arith.constant dense<0.000000e+00> : vector<16xf32>
    %25 = vector.multi_reduction <add>, %24, %cst_22 [1] : vector<16x384xf32> to vector<16xf32>
    %26 = vector.shape_cast %25 : vector<16xf32> to vector<16x1xf32>
    %27 = arith.mulf %24, %24 : vector<16x384xf32>
    %cst_23 = arith.constant dense<0.000000e+00> : vector<16xf32>
    %28 = vector.multi_reduction <add>, %27, %cst_23 [1] : vector<16x384xf32> to vector<16xf32>
    %29 = vector.shape_cast %28 : vector<16xf32> to vector<16x1xf32>
    %30 = vector.shape_cast %26 : vector<16x1xf32> to vector<8x2x1xf32>
    %cst_24 = arith.constant dense<0.000000e+00> : vector<8x1xf32>
    %31 = vector.multi_reduction <add>, %30, %cst_24 [1] : vector<8x2x1xf32> to vector<8x1xf32>
    %32 = vector.shape_cast %31 : vector<8x1xf32> to vector<8x1x1xf32>
    %33 = vector.shape_cast %29 : vector<16x1xf32> to vector<8x2x1xf32>
    %cst_25 = arith.constant dense<0.000000e+00> : vector<8x1xf32>
    %34 = vector.multi_reduction <add>, %33, %cst_25 [1] : vector<8x2x1xf32> to vector<8x1xf32>
    %35 = vector.shape_cast %34 : vector<8x1xf32> to vector<8x1x1xf32>
    %cst_26 = arith.constant 0.001953125 : f32
    %36 = vector.broadcast %cst_26 : f32 to vector<8x1x1xf32>
    %37 = arith.mulf %32, %36 : vector<8x1x1xf32>
    %cst_27 = arith.constant 0.001953125 : f32
    %38 = vector.broadcast %cst_27 : f32 to vector<8x1x1xf32>
    %39 = arith.mulf %35, %38 : vector<8x1x1xf32>
    %40 = arith.mulf %37, %37 : vector<8x1x1xf32>
    %41 = arith.subf %39, %40 : vector<8x1x1xf32>
    %cst_28 = arith.constant 0.000000e+00 : f32
    %42 = vector.broadcast %cst_28 : f32 to vector<8x1x1xf32>
    %43 = arith.maximumf %41, %42 : vector<8x1x1xf32>
    %cst_29 = arith.constant 9.99999974E-6 : f32
    %44 = vector.broadcast %cst_29 : f32 to vector<8x1x1xf32>
    %45 = arith.addf %43, %44 : vector<8x1x1xf32>
    %46 = math.rsqrt %45 : vector<8x1x1xf32>
    %47 = vector.shape_cast %37 : vector<8x1x1xf32> to vector<8x1x1xf32>
    %48 = vector.broadcast %47 : vector<8x1x1xf32> to vector<8x2x1xf32>
    %49 = vector.shape_cast %48 : vector<8x2x1xf32> to vector<16x1xf32>
    %50 = vector.shape_cast %46 : vector<8x1x1xf32> to vector<8x1x1xf32>
    %51 = vector.broadcast %50 : vector<8x1x1xf32> to vector<8x2x1xf32>
    %52 = vector.shape_cast %51 : vector<8x2x1xf32> to vector<16x1xf32>
    %c0_30 = arith.constant 0 : index
    %c0_31 = arith.constant 0 : index
    %53 = vector.load %arg4[%c0_30, %c0_31] : memref<16x1xf32, #tpu.memory_space<vmem>>, vector<16x1xf32>
    %54 = arith.mulf %53, %52 : vector<16x1xf32>
    %c0_32 = arith.constant 0 : index
    %c0_33 = arith.constant 0 : index
    %55 = vector.load %arg5[%c0_32, %c0_33] : memref<16x1xf32, #tpu.memory_space<vmem>>, vector<16x1xf32>
    %56 = arith.mulf %49, %54 : vector<16x1xf32>
    %57 = arith.subf %55, %56 : vector<16x1xf32>
    %58 = vector.broadcast %54 : vector<16x1xf32> to vector<16x384xf32>
    %59 = arith.mulf %21, %58 : vector<16x384xf32>
    %60 = vector.broadcast %57 : vector<16x1xf32> to vector<16x384xf32>
    %61 = arith.addf %59, %60 : vector<16x384xf32>
    %cst_34 = arith.constant 0.000000e+00 : f32
    %62 = vector.broadcast %cst_34 : f32 to vector<16x384xf32>
    %63 = arith.maximumf %61, %62 : vector<16x384xf32>
    %c0_35 = arith.constant 0 : index
    %c0_36 = arith.constant 0 : index
    %c0_37 = arith.constant 0 : index
    %64 = vector.load %arg6[%c0_35, %c0_36, %c0_37] : memref<1x16x384xf32, #tpu.memory_space<vmem>>, vector<1x16x384xf32>
    %65 = vector.shape_cast %64 : vector<1x16x384xf32> to vector<16x384xf32>
    %66 = vector.shape_cast %63 : vector<16x384xf32> to vector<1x16x384xf32>
    tpu.vector_store %arg6[%c0_35, %c0_36, %c0_37], %66 {strides = array<i32>} : memref<1x16x384xf32, #tpu.memory_space<vmem>>, vector<1x16x384xf32>,
    return
  }
  func.func @transform_0(%arg0: i32) -> (i32, i32, i32) {
    %c0_i32 = arith.constant 0 : i32
    %c0_i32_0 = arith.constant 0 : i32
    %c0_i32_1 = arith.constant 0 : i32
    return %arg0, %c0_i32, %c0_i32_0 : i32, i32, i32
  }
  func.func @transform_1(%arg0: i32) -> (i32, i32) {
    %c0_i32 = arith.constant 0 : i32
    %c0_i32_0 = arith.constant 0 : i32
    %c0_i32_1 = arith.constant 0 : i32
    return %c0_i32, %c0_i32_0 : i32, i32
  }
  func.func @transform_2(%arg0: i32) -> (i32, i32) {
    %c0_i32 = arith.constant 0 : i32
    %c0_i32_0 = arith.constant 0 : i32
    %c0_i32_1 = arith.constant 0 : i32
    return %c0_i32, %c0_i32_0 : i32, i32
  }
  func.func @transform_3(%arg0: i32) -> (i32, i32) {
    %c0_i32 = arith.constant 0 : i32
    %c0_i32_0 = arith.constant 0 : i32
    %c0_i32_1 = arith.constant 0 : i32
    return %c0_i32, %c0_i32_0 : i32, i32
  }
  func.func @transform_4(%arg0: i32) -> (i32, i32) {
    %c0_i32 = arith.constant 0 : i32
    %c0_i32_0 = arith.constant 0 : i32
    %c0_i32_1 = arith.constant 0 : i32
    return %c0_i32, %c0_i32_0 : i32, i32
  }
  func.func @transform_5(%arg0: i32) -> (i32, i32, i32) {
    %c0_i32 = arith.constant 0 : i32
    %c0_i32_0 = arith.constant 0 : i32
    %c0_i32_1 = arith.constant 0 : i32
    return %arg0, %c0_i32, %c0_i32_0 : i32, i32, i32
  }
}

</mosaic_0001>

<llo_original>
// kernel: tpu_custom_call.1
$region0: #{tpu_custom_call.1}
  #allocation0 [shape = 'u32[]', space=smem, size = 0x4, offset = 0x4, fixed_abs, tag = 'smem constant byte address 0x4 - core index']
  #allocation1 [shape = 'u32[144,128]{1,0:T(1,128)}', space=vmem, size = 0x12000, scoped, tag = 'internal scratch']
  %s0 = inlined_call_operand.hbm [shape: f32[2,8,432], index: 0, kind: input, shape index: {}]
  %s1 = inlined_call_operand.vmem [shape: bf16[16,72], index: 1, kind: input, shape index: {}]
  %s2 = inlined_call_operand.vmem [shape: f32[1,384], index: 2, kind: input, shape index: {}]
  %s3 = inlined_call_operand.vmem [shape: f32[16,1], index: 3, kind: input, shape index: {}]
  %s4 = inlined_call_operand.vmem [shape: f32[16,1], index: 4, kind: input, shape index: {}]
  %s5 = inlined_call_operand.hbm [shape: f32[2,16,384], index: 5, kind: output, shape index: {}]
  %s6 = sld [smem:[#allocation0]]
  $region57: #{tpu_custom_call.1} parent=0
    _
  %s8 = ssub.s32 1, %s6
  %s9 = scalar_select 0, %s8, %s6
  $region1: #{tpu_custom_call.1} parent=0
    #allocation2 [shape = 'u8[32768]{0}', space=vmem, size = 0x8000, scoped, tag = 'input window, operand 0']
    #allocation3 [shape = 's32[2]{0}', space=sflag, size = 0x8, scoped, tag = 'scoped memory for tpu_custom_call.1']
    #allocation4 [shape = 's32[2]{0}', space=sflag, size = 0x8, scoped, tag = 'scoped memory for tpu_custom_call.1']
    #allocation5 [shape = 'u8[49152]{0}', space=vmem, size = 0xc000, scoped, tag = 'output window, operand 0']
    %10 = vsyncpa [#allocation3], 0
    %s11 = scalar_lea.sflag [#allocation3], 1
    %12 = vsyncpa %s11, 0
    %13 = vsyncpa [#allocation4], 0
    %s14 = scalar_lea.sflag [#allocation4], 1
    %15 = vsyncpa %s14, 0
    loop: start=0, step=1, limit=4
    $region2: #{tpu_custom_call.1} parent=1 // loop_pre_header
      _
    $region3: #{tpu_custom_call.1} parent=1 // loop_header
      %s17 = sphi 0, %s21
      %p18 = scmp.ge.s32.totalorder %s17, 4
      %s27 = sphi 0, %s29
      %s30 = sphi 0, %s27
      %s31 = sphi 0, %s30
      %s47 = sphi 0, %s31
      %s51 = sphi 0, %s51
      %s53 = sphi 0, %s51
      %s54 = sphi 0, %s53
      %s68 = sphi 0, %s54
      %s72 = sphi 0, %s72
      %s74 = sphi 0, %s72
      %s75 = sphi 0, %s74
      %s89 = sphi 0, %s75
      %s93 = sphi 0, %s93
      %s95 = sphi 0, %s93
      %s96 = sphi 0, %s95
      %s110 = sphi 0, %s96
      %s114 = sphi 0, %s114
      %s116 = sphi 0, %s114
      %s117 = sphi 0, %s116
      %s131 = sphi 0, %s117
      %s137 = sphi 0, %s139
      %s140 = sphi 0, %s137
      %s141 = sphi 0, %s140
      %s157 = sphi 0, %s141
    $region4: #{tpu_custom_call.1} parent=1 // loop_header_branch
      %20 = sbr.rel (%p18) target = $region8
    $region5: #{tpu_custom_call.1} parent=1 // loop_body
      %s22 = ssub.s32 %s17, 1
      %s23 = ssub.s32 %s17, 2
      %s24 = sadd.s32 %s17, 1
      %s25 = ssub.s32 %s17, %s24
      %p26 = scmp.eq.s32.totalorder %s25, 0
      %s28 = sadd.s32 %s27, 1
      %s29 = scalar_select %p26, %s27, %s28
      %p32 = pneg %p26
      %p33 = scmp.eq.s32.totalorder %s17, 1
      %p34 = por %p32, %p33
      %p35 = scmp.ne.s32.totalorder %s27, %s30
      %p36 = scmp.eq.s32.totalorder %s17, 0
      %p37 = por %p35, %p36
      %p38 = scmp.ne.s32.totalorder %s27, %s30
      %p39 = scmp.eq.s32.totalorder %s22, 1
      %p40 = por %p38, %p39
      %p41 = scmp.ne.s32.totalorder %s30, %s31
      %p42 = scmp.eq.s32.totalorder %s22, 0
      %p43 = por %p41, %p42
      %p44 = scmp.ne.s32.totalorder %s30, %s31
      %p45 = scmp.eq.s32.totalorder %s23, 1
      %p46 = por %p44, %p45
      %p48 = scmp.ne.s32.totalorder %s31, %s47
      %p49 = scmp.eq.s32.totalorder %s23, 0
      %p50 = por %p48, %p49
      %s52 = sadd.s32 %s51, 1
      %p55 = scmp.eq.s32.totalorder %s17, 1
      %p56 = scmp.ne.s32.totalorder %s51, %s53
      %p57 = scmp.eq.s32.totalorder %s17, 0
      %p58 = por %p56, %p57
      %p59 = scmp.ne.s32.totalorder %s51, %s53
      %p60 = scmp.eq.s32.totalorder %s22, 1
      %p61 = por %p59, %p60
      %p62 = scmp.ne.s32.totalorder %s53, %s54
      %p63 = scmp.eq.s32.totalorder %s22, 0
      %p64 = por %p62, %p63
      %p65 = scmp.ne.s32.totalorder %s53, %s54
      %p66 = scmp.eq.s32.totalorder %s23, 1
      %p67 = por %p65, %p66
      %p69 = scmp.ne.s32.totalorder %s54, %s68
      %p70 = scmp.eq.s32.totalorder %s23, 0
      %p71 = por %p69, %p70
      %s73 = sadd.s32 %s72, 1
      %p76 = scmp.eq.s32.totalorder %s17, 1
      %p77 = scmp.ne.s32.totalorder %s72, %s74
      %p78 = scmp.eq.s32.totalorder %s17, 0
      %p79 = por %p77, %p78
      %p80 = scmp.ne.s32.totalorder %s72, %s74
      %p81 = scmp.eq.s32.totalorder %s22, 1
      %p82 = por %p80, %p81
      %p83 = scmp.ne.s32.totalorder %s74, %s75
      %p84 = scmp.eq.s32.totalorder %s22, 0
      %p85 = por %p83, %p84
      %p86 = scmp.ne.s32.totalorder %s74, %s75
      %p87 = scmp.eq.s32.totalorder %s23, 1
      %p88 = por %p86, %p87
      %p90 = scmp.ne.s32.totalorder %s75, %s89
      %p91 = scmp.eq.s32.totalorder %s23, 0
      %p92 = por %p90, %p91
      %s94 = sadd.s32 %s93, 1
      %p97 = scmp.eq.s32.totalorder %s17, 1
      %p98 = scmp.ne.s32.totalorder %s93, %s95
      %p99 = scmp.eq.s32.totalorder %s17, 0
      %p100 = por %p98, %p99
      %p101 = scmp.ne.s32.totalorder %s93, %s95
      %p102 = scmp.eq.s32.totalorder %s22, 1
      %p103 = por %p101, %p102
      %p104 = scmp.ne.s32.totalorder %s95, %s96
      %p105 = scmp.eq.s32.totalorder %s22, 0
      %p106 = por %p104, %p105
      %p107 = scmp.ne.s32.totalorder %s95, %s96
      %p108 = scmp.eq.s32.totalorder %s23, 1
      %p109 = por %p107, %p108
      %p111 = scmp.ne.s32.totalorder %s96, %s110
      %p112 = scmp.eq.s32.totalorder %s23, 0
      %p113 = por %p111, %p112
      %s115 = sadd.s32 %s114, 1
      %p118 = scmp.eq.s32.totalorder %s17, 1
      %p119 = scmp.ne.s32.totalorder %s114, %s116
      %p120 = scmp.eq.s32.totalorder %s17, 0
      %p121 = por %p119, %p120
      %p122 = scmp.ne.s32.totalorder %s114, %s116
      %p123 = scmp.eq.s32.totalorder %s22, 1
      %p124 = por %p122, %p123
      %p125 = scmp.ne.s32.totalorder %s116, %s117
      %p126 = scmp.eq.s32.totalorder %s22, 0
      %p127 = por %p125, %p126
      %p128 = scmp.ne.s32.totalorder %s116, %s117
      %p129 = scmp.eq.s32.totalorder %s23, 1
      %p130 = por %p128, %p129
      %p132 = scmp.ne.s32.totalorder %s117, %s131
      %p133 = scmp.eq.s32.totalorder %s23, 0
      %p134 = por %p132, %p133
      %s135 = ssub.s32 %s17, %s24
      %p136 = scmp.eq.s32.totalorder %s135, 0
      %s138 = sadd.s32 %s137, 1
      %s139 = scalar_select %p136, %s137, %s138
      %p142 = pneg %p136
      %p143 = scmp.eq.s32.totalorder %s17, 1
      %p144 = por %p142, %p143
      %p145 = scmp.ne.s32.totalorder %s137, %s140
      %p146 = scmp.eq.s32.totalorder %s17, 0
      %p147 = por %p145, %p146
      %p148 = scmp.ne.s32.totalorder %s137, %s140
      %p149 = scmp.eq.s32.totalorder %s22, 1
      %p150 = por %p148, %p149
      %p151 = scmp.ne.s32.totalorder %s140, %s141
      %p152 = scmp.eq.s32.totalorder %s22, 0
      %p153 = por %p151, %p152
      %p154 = scmp.ne.s32.totalorder %s140, %s141
      %p155 = scmp.eq.s32.totalorder %s23, 1
      %p156 = por %p154, %p155
      %p158 = scmp.ne.s32.totalorder %s141, %s157
      %p159 = scmp.eq.s32.totalorder %s23, 0
      %p160 = por %p158, %p159
      %p161 = scmp.le.s32.totalorder 1, %s17
      %p162 = scmp.lt.s32.totalorder %s17, 3
      %p163 = pnand %p161, %p162
      %p164 = pneg %p163
      // Predicated region
      $region9: #{tpu_custom_call.1} parent=5 // pred_check
        _
      $region10: #{tpu_custom_call.1} parent=5 // pred_check_branch
        %166 = sbr.rel (%p163) target = $region12
      $region11: #{tpu_custom_call.1} parent=5 // pred_region
        %s167 = ssub.s32 %s17, 1
        // Predicated region
        $region13: #{tpu_custom_call.1} parent=11 // pred_check
          %p168 = pneg %p64
        $region14: #{tpu_custom_call.1} parent=11 // pred_check_branch
          %170 = sbr.rel (%p168) target = $region16
        $region15: #{tpu_custom_call.1} parent=11 // pred_region
          _
        $region16: #{tpu_custom_call.1} parent=11 // pred_fallthru
          _
        // Predicated region
        $region17: #{tpu_custom_call.1} parent=11 // pred_check
          %p171 = pneg %p85
        $region18: #{tpu_custom_call.1} parent=11 // pred_check_branch
          %173 = sbr.rel (%p171) target = $region20
        $region19: #{tpu_custom_call.1} parent=11 // pred_region
          _
        $region20: #{tpu_custom_call.1} parent=11 // pred_fallthru
          _
        // Predicated region
        $region21: #{tpu_custom_call.1} parent=11 // pred_check
          %p174 = pneg %p106
        $region22: #{tpu_custom_call.1} parent=11 // pred_check_branch
          %176 = sbr.rel (%p174) target = $region24
        $region23: #{tpu_custom_call.1} parent=11 // pred_region
          _
        $region24: #{tpu_custom_call.1} parent=11 // pred_fallthru
          _
        // Predicated region
        $region25: #{tpu_custom_call.1} parent=11 // pred_check
          %p177 = pneg %p127
        $region26: #{tpu_custom_call.1} parent=11 // pred_check_branch
          %179 = sbr.rel (%p177) target = $region28
        $region27: #{tpu_custom_call.1} parent=11 // pred_region
          _
        $region28: #{tpu_custom_call.1} parent=11 // pred_fallthru
          _
      $region12: #{tpu_custom_call.1} parent=5 // pred_fallthru
        _
      %p180 = scmp.lt.s32.totalorder %s17, 2
      // Predicated region
      $region29: #{tpu_custom_call.1} parent=5 // pred_check
        %p181 = pneg %p180
      $region30: #{tpu_custom_call.1} parent=5 // pred_check_branch
        %183 = sbr.rel (%p181) target = $region32
      $region31: #{tpu_custom_call.1} parent=5 // pred_region
        // Predicated region
        $region33: #{tpu_custom_call.1} parent=31 // pred_check
          %p184 = pneg %p37
        $region34: #{tpu_custom_call.1} parent=31 // pred_check_branch
          %186 = sbr.rel (%p184) target = $region36
        $region35: #{tpu_custom_call.1} parent=31 // pred_region
          %s187 = sand.u32 %s27, 1
          %s188 = scalar_lea.sflag [#allocation3], %s187
          %s189 = sand.u32 %s27, 1
          %s190 = smul.addr %s189, 32
          %s191 = scalar_lea.vmem [#allocation2], %s190
          %s193 = ssub.s32 512, 512
          %194 = vsyncadd %s188, %s193
          %s195 = smul.addr %s17, 4
          %s196 = smul.addr %s195, 128
          %s197 = scalar_lea.hbm %s0, %s196
          %s199 = sshll.u32 %s191, 4
          %s200 = int_to_ptr.vmem [resolvable:$true] %s199
          %202 = dma.hbm_to_vmem [thread:$0]  %s197, 512, %s200, %s188
        $region36: #{tpu_custom_call.1} parent=31 // pred_fallthru
          _
      $region32: #{tpu_custom_call.1} parent=5 // pred_fallthru
        _
      %p203 = scmp.le.s32.totalorder 1, %s17
      %p204 = scmp.lt.s32.totalorder %s17, 3
      %p205 = pnand %p203, %p204
      %p206 = pneg %p205
      // Predicated region
      $region37: #{tpu_custom_call.1} parent=5 // pred_check
        _
      $region38: #{tpu_custom_call.1} parent=5 // pred_check_branch
        %208 = sbr.rel (%p205) target = $region40
      $region39: #{tpu_custom_call.1} parent=5 // pred_region
        %s209 = ssub.s32 %s17, 1
        %s210 = sand.u32 %s30, 1
        %s211 = scalar_lea.sflag [#allocation3], %s210
        %s212 = sand.u32 %s30, 1
        %s213 = smul.addr %s212, 32
        %s214 = scalar_lea.vmem [#allocation2], %s213
        // Predicated region
        $region41: #{tpu_custom_call.1} parent=39 // pred_check
          %p215 = pneg %p43
        $region42: #{tpu_custom_call.1} parent=39 // pred_check_branch
          %217 = sbr.rel (%p215) target = $region44
        $region43: #{tpu_custom_call.1} parent=39 // pred_region
          %218 = dma.done %s211, 512
        $region44: #{tpu_custom_call.1} parent=39 // pred_fallthru
          _
        %s219 = sand.u32 %s30, 1
        %s220 = scalar_lea.sflag [#allocation3], %s219
        %s221 = sand.u32 %s30, 1
        %s222 = smul.addr %s221, 32
        %s223 = scalar_lea.vmem [#allocation2], %s222
        %p224 = pneg %p43
        %p225 = pneg %p40
        %p226 = pneg %p64
        %p227 = pneg %p61
        %p228 = pneg %p85
        %p229 = pneg %p82
        %p230 = pneg %p106
        %p231 = pneg %p103
        %p232 = pneg %p127
        %p233 = pneg %p124
        %p234 = pneg %p153
        %p235 = pneg %p150
        %s236 = sand.u32 %s140, 1
        %s237 = scalar_lea.sflag [#allocation4], %s236
        %s238 = sand.u32 %s140, 1
        %s239 = smul.addr %s238, 48
        %s240 = scalar_lea.vmem [#allocation5], %s239
        %v242 = vld [vmem:[%s214] sm:$0xff]
        %v243 = vld [vmem:[%s214 + $0x8] sm:$0xff]
        %v244 = vld [vmem:[%s214 + $0x10] sm:$0xff]
        %v245 = vld [vmem:[%s214 + $0x18] sm:$0xff]
        %250 = vrot.lane.b32.xlu0 %v242, 127
        %v251 = vpop.permute.xlu0 %250
        %252 = vrot.lane.b32.xlu0 %v243, 127
        %v253 = vpop.permute.xlu0 %252
        %254 = vrot.lane.b32.xlu0 %v244, 127
        %v255 = vpop.permute.xlu0 %254
        %256 = vrot.lane.b32.xlu0 %v245, 127
        %v257 = vpop.permute.xlu0 %256
        %vm258 = vcmask 1039360
        %v259 = vsel %vm258, %v251, %v253
        %v260 = vsel %vm258, %v253, %v255
        %v261 = vsel %vm258, %v255, %v257
        %265 = vrot.lane.b32.xlu0 %v242, 126
        %v266 = vpop.permute.xlu0 %265
        %267 = vrot.lane.b32.xlu0 %v243, 126
        %v268 = vpop.permute.xlu0 %267
        %269 = vrot.lane.b32.xlu0 %v244, 126
        %v270 = vpop.permute.xlu0 %269
        %271 = vrot.lane.b32.xlu0 %v245, 126
        %v272 = vpop.permute.xlu0 %271
        %vm273 = vcmask 1031168
        %v274 = vsel %vm273, %v266, %v268
        %v275 = vsel %vm273, %v268, %v270
        %v276 = vsel %vm273, %v270, %v272
        %280 = vrot.lane.b32.xlu0 %v242, 110
        %v281 = vpop.permute.xlu0 %280
        %282 = vrot.lane.b32.xlu0 %v243, 110
        %v283 = vpop.permute.xlu0 %282
        %284 = vrot.lane.b32.xlu0 %v244, 110
        %v285 = vpop.permute.xlu0 %284
        %286 = vrot.lane.b32.xlu0 %v245, 110
        %v287 = vpop.permute.xlu0 %286
        %vm288 = vcmask 900096
        %v289 = vsel %vm288, %v281, %v283
        %v290 = vsel %vm288, %v283, %v285
        %v291 = vsel %vm288, %v285, %v287
        %295 = vrot.lane.b32.xlu0 %v242, 109
        %v296 = vpop.permute.xlu0 %295
        %297 = vrot.lane.b32.xlu0 %v243, 109
        %v298 = vpop.permute.xlu0 %297
        %299 = vrot.lane.b32.xlu0 %v244, 109
        %v300 = vpop.permute.xlu0 %299
        %301 = vrot.lane.b32.xlu0 %v245, 109
        %v302 = vpop.permute.xlu0 %301
        %vm303 = vcmask 891904
        %v304 = vsel %vm303, %v296, %v298
        %v305 = vsel %vm303, %v298, %v300
        %v306 = vsel %vm303, %v300, %v302
        %310 = vrot.lane.b32.xlu0 %v242, 108
        %v311 = vpop.permute.xlu0 %310
        %312 = vrot.lane.b32.xlu0 %v243, 108
        %v313 = vpop.permute.xlu0 %312
        %314 = vrot.lane.b32.xlu0 %v244, 108
        %v315 = vpop.permute.xlu0 %314
        %316 = vrot.lane.b32.xlu0 %v245, 108
        %v317 = vpop.permute.xlu0 %316
        %vm318 = vcmask 883712
        %v319 = vsel %vm318, %v311, %v313
        %v320 = vsel %vm318, %v313, %v315
        %v321 = vsel %vm318, %v315, %v317
        %325 = vrot.lane.b32.xlu0 %v242, 92
        %v326 = vpop.permute.xlu0 %325
        %327 = vrot.lane.b32.xlu0 %v243, 92
        %v328 = vpop.permute.xlu0 %327
        %329 = vrot.lane.b32.xlu0 %v244, 92
        %v330 = vpop.permute.xlu0 %329
        %331 = vrot.lane.b32.xlu0 %v245, 92
        %v332 = vpop.permute.xlu0 %331
        %vm333 = vcmask 752640
        %v334 = vsel %vm333, %v326, %v328
        %v335 = vsel %vm333, %v328, %v330
        %v336 = vsel %vm333, %v330, %v332
        %340 = vrot.lane.b32.xlu0 %v242, 91
        %v341 = vpop.permute.xlu0 %340
        %342 = vrot.lane.b32.xlu0 %v243, 91
        %v343 = vpop.permute.xlu0 %342
        %344 = vrot.lane.b32.xlu0 %v244, 91
        %v345 = vpop.permute.xlu0 %344
        %346 = vrot.lane.b32.xlu0 %v245, 91
        %v347 = vpop.permute.xlu0 %346
        %vm348 = vcmask 744448
        %v349 = vsel %vm348, %v341, %v343
        %v350 = vsel %vm348, %v343, %v345
        %v351 = vsel %vm348, %v345, %v347
        %355 = vrot.lane.b32.xlu0 %v242, 90
        %v356 = vpop.permute.xlu0 %355
        %357 = vrot.lane.b32.xlu0 %v243, 90
        %v358 = vpop.permute.xlu0 %357
        %359 = vrot.lane.b32.xlu0 %v244, 90
        %v360 = vpop.permute.xlu0 %359
        %361 = vrot.lane.b32.xlu0 %v245, 90
        %v362 = vpop.permute.xlu0 %361
        %vm363 = vcmask 736256
        %v364 = vsel %vm363, %v356, %v358
        %v365 = vsel %vm363, %v358, %v360
        %v366 = vsel %vm363, %v360, %v362
        %v370 = vpack.c.bf16 %v259, %v242
        %v371 = vpack.c.bf16 %v260, %v243
        %v372 = vpack.c.bf16 %v261, %v244
        %v373 = vpack.c.bf16 %v289, %v274
        %v374 = vpack.c.bf16 %v290, %v275
        %v375 = vpack.c.bf16 %v291, %v276
        %v376 = vpack.c.bf16 %v319, %v304
        %v377 = vpack.c.bf16 %v320, %v305
        %v378 = vpack.c.bf16 %v321, %v306
        %v379 = vpack.c.bf16 %v349, %v334
        %v380 = vpack.c.bf16 %v350, %v335
        %v381 = vpack.c.bf16 %v351, %v336
        %v382 = vpack.c.bf16 %v364, %v364
        %v383 = vpack.c.bf16 %v365, %v365
        %v384 = vpack.c.bf16 %v366, %v366
        %v385 = vld [vmem:[%s1] sm:$0xf]
        %v386 = vld [vmem:[%s1 + $0x4] sm:$0xf]
        %v389 = vunpack.c.l.b16 %v385
        %v390 = vunpack.c.l.b16 %v386
        %v391 = vpack.c.b16 %v390, %v389
        %vm392 = vcmask 588800
        %v394 = vsel %vm392, %v391, 0
        %vm396 = vcmask 1043456
        %v398 = vsel %vm396, %v382, 0
        %v401 = vsel %vm396, %v383, 0
        %v404 = vsel %vm396, %v384, 0
        %406 = vmatprep.subr.bf16.mxu0 %v371
        %407 = vmatpush1.bf16.msra.mxu0 %v370
        %408 = vmatprep.subr.bf16.mxu0 %v374
        %409 = vmatpush1.bf16.msra.mxu0 %v373
        %410 = vmatprep.subr.bf16.mxu0 %v377
        %411 = vmatpush1.bf16.msra.mxu0 %v376
        %412 = vmatprep.subr.bf16.mxu0 %v380
        %413 = vmatpush1.bf16.msra.mxu0 %v379
        %414 = vmatprep.subr.bf16.mxu0 %v401
        %415 = vmatpush1.bf16.msra.mxu0 %v398
        %416 = vmatprep.subr.bf16.mxu0 0
        %417 = vmatpush1.bf16.msra.mxu0 0
        %418 = vmatprep.subr.bf16.mxu0 0
        %419 = vmatpush1.bf16.msra.mxu0 0
        %420 = vmatprep.subr.bf16.mxu0 0
        %421 = vmatpush1.bf16.msra.mxu0 0
        %422 = vmatprep.subr.bf16.mxu0 0
        %423 = vmatpush1.bf16.msra.mxu0 0
        %424 = vmatprep.subr.bf16.mxu0 0
        %425 = vmatpush1.bf16.msra.mxu0 0
        %426 = vmatprep.subr.bf16.mxu0 0
        %427 = vmatpush1.bf16.msra.mxu0 0
        %428 = vmatprep.subr.bf16.mxu0 0
        %429 = vmatpush1.bf16.msra.mxu0 0
        %430 = vmatprep.subr.bf16.mxu0 0
        %431 = vmatpush1.bf16.msra.mxu0 0
        %432 = vmatprep.subr.bf16.mxu0 0
        %433 = vmatpush1.bf16.msra.mxu0 0
        %434 = vmatprep.subr.bf16.mxu0 0
        %435 = vmatpush1.bf16.msra.mxu0 0
        %436 = vmatprep.subr.bf16.mxu0 0
        %437 = vmatpush1.bf16.msra.mxu0 0
        %438 = vmatprep.mubr.bf16.mxu0 0
        %439 = vmatmul.mubr.bf16.gmra.mrb[0].mxu0 %v394
        %v440 = vpop.f32.mrb[0].mxu0
        %v441 = vadd.f32 0.0, %v440
        %v442 = vpop.f32.mrb[0].mxu0
        %v443 = vadd.f32 0.0, %v442
        %v444 = vpop.f32.mrb[0].mxu0
        %v445 = vadd.f32 0.0, %v444
        %v446 = vpop.f32.mrb[0].mxu0
        %v447 = vadd.f32 0.0, %v446
        %448 = vdwg.mxu0
        %449 = vmatprep.subr.bf16.mxu0 0
        %450 = vmatpush1.bf16.msra.mxu0 %v372
        %451 = vmatprep.subr.bf16.mxu0 0
        %452 = vmatpush1.bf16.msra.mxu0 %v375
        %453 = vmatprep.subr.bf16.mxu0 0
        %454 = vmatpush1.bf16.msra.mxu0 %v378
        %455 = vmatprep.subr.bf16.mxu0 0
        %456 = vmatpush1.bf16.msra.mxu0 %v381
        %457 = vmatprep.subr.bf16.mxu0 0
        %458 = vmatpush1.bf16.msra.mxu0 %v404
        %459 = vmatprep.subr.bf16.mxu0 0
        %460 = vmatpush1.bf16.msra.mxu0 0
        %461 = vmatprep.subr.bf16.mxu0 0
        %462 = vmatpush1.bf16.msra.mxu0 0
        %463 = vmatprep.subr.bf16.mxu0 0
        %464 = vmatpush1.bf16.msra.mxu0 0
        %465 = vmatprep.subr.bf16.mxu0 0
        %466 = vmatpush1.bf16.msra.mxu0 0
        %467 = vmatprep.subr.bf16.mxu0 0
        %468 = vmatpush1.bf16.msra.mxu0 0
        %469 = vmatprep.subr.bf16.mxu0 0
        %470 = vmatpush1.bf16.msra.mxu0 0
        %471 = vmatprep.subr.bf16.mxu0 0
        %472 = vmatpush1.bf16.msra.mxu0 0
        %473 = vmatprep.subr.bf16.mxu0 0
        %474 = vmatpush1.bf16.msra.mxu0 0
        %475 = vmatprep.subr.bf16.mxu0 0
        %476 = vmatpush1.bf16.msra.mxu0 0
        %477 = vmatprep.subr.bf16.mxu0 0
        %478 = vmatpush1.bf16.msra.mxu0 0
        %479 = vmatprep.subr.bf16.mxu0 0
        %480 = vmatpush1.bf16.msra.mxu0 0
        %481 = vmatprep.mubr.bf16.mxu0 0
        %482 = vmatmul.mubr.bf16.gmra.mrb[0].mxu0 %v394
        %v483 = vpop.f32.mrb[0].mxu0
        %v484 = vadd.f32 0.0, %v483
        %v485 = vpop.f32.mrb[0].mxu0
        %v486 = vpop.f32.mrb[0].mxu0
        %v487 = vadd.f32 0.0, %v486
        %v488 = vpop.f32.mrb[0].mxu0
        %489 = vdwg.mxu0
        %v490 = vld [vmem:[%s2] sm:$0x7]
        %v492 = vlaneseq
        %v493 = vshrl.u32 %v492, 7
        %v494 = vsub.s32 0, %v493
        %v495 = vrot.slane %v490, %v494
        %v496 = vlaneseq
        %v497 = vshrl.u32 %v496, 7
        %v498 = vsub.s32 1, %v497
        %v499 = vrot.slane %v490, %v498
        %v500 = vlaneseq
        %v501 = vshrl.u32 %v500, 7
        %v502 = vsub.s32 2, %v501
        %v503 = vrot.slane %v490, %v502
        %v507 = vmul.f32 %v441, %v495
        %v508 = vmul.f32 %v443, %v499
        %v509 = vmul.f32 %v484, %v503
        %v510 = vmul.f32 %v445, %v495
        %v511 = vmul.f32 %v447, %v499
        %v512 = vmul.f32 %v487, %v503
        %v513 = vadd.f32 %v507, %v508
        %v514 = vadd.f32 %v513, %v509
        %515 = vadd.xlane.f32.xlu0 %v514
        %v516 = vpop.xlane.xlu0 %515
        %v517 = vadd.f32 %v510, %v511
        %v518 = vadd.f32 %v517, %v512
        %519 = vadd.xlane.f32.xlu0 %v518
        %v520 = vpop.xlane.xlu0 %519
        %v521 = vmul.f32 %v507, %v507
        %v522 = vmul.f32 %v508, %v508
        %v523 = vmul.f32 %v509, %v509
        %v524 = vmul.f32 %v510, %v510
        %v525 = vmul.f32 %v511, %v511
        %v526 = vmul.f32 %v512, %v512
        %v527 = vadd.f32 %v521, %v522
        %v528 = vadd.f32 %v527, %v523
        %529 = vadd.xlane.f32.xlu0 %v528
        %v530 = vpop.xlane.xlu0 %529
        %v531 = vadd.f32 %v524, %v525
        %v532 = vadd.f32 %v531, %v526
        %533 = vadd.xlane.f32.xlu0 %v532
        %v534 = vpop.xlane.xlu0 %533
        %v538 = vunpack.c.l.s4 269488144
        %v539 = vunpack.c.0.s8 %v538
        %v540 = vlaneseq
        %v541 = vshrl.u32 %v540, 7
        %v542 = vsub.s32 %v539, %v541
        %v543 = vrot.slane %v516, %v542
        %v545 = vunpack.c.l.s4 842150450
        %v546 = vunpack.c.0.s8 %v545
        %v547 = vlaneseq
        %v548 = vshrl.u32 %v547, 7
        %v549 = vsub.s32 %v546, %v548
        %v550 = vrot.slane %v516, %v549
        %v552 = vunpack.c.l.s4 1414812756
        %v553 = vunpack.c.0.s8 %v552
        %v554 = vlaneseq
        %v555 = vshrl.u32 %v554, 7
        %v556 = vsub.s32 %v553, %v555
        %v557 = vrot.slane %v516, %v556
        %v559 = vunpack.c.l.s4 1987475062
        %v560 = vunpack.c.0.s8 %v559
        %v561 = vlaneseq
        %v562 = vshrl.u32 %v561, 7
        %v563 = vsub.s32 %v560, %v562
        %v564 = vrot.slane %v516, %v563
        %v566 = vunpack.c.l.s4 269488144
        %v567 = vunpack.c.0.s8 %v566
        %v568 = vlaneseq
        %v569 = vshrl.u32 %v568, 7
        %v570 = vsub.s32 %v567, %v569
        %v571 = vrot.slane %v520, %v570
        %v573 = vunpack.c.l.s4 842150450
        %v574 = vunpack.c.0.s8 %v573
        %v575 = vlaneseq
        %v576 = vshrl.u32 %v575, 7
        %v577 = vsub.s32 %v574, %v576
        %v578 = vrot.slane %v520, %v577
        %v580 = vunpack.c.l.s4 1414812756
        %v581 = vunpack.c.0.s8 %v580
        %v582 = vlaneseq
        %v583 = vshrl.u32 %v582, 7
        %v584 = vsub.s32 %v581, %v583
        %v585 = vrot.slane %v520, %v584
        %v587 = vunpack.c.l.s4 1987475062
        %v588 = vunpack.c.0.s8 %v587
        %v589 = vlaneseq
        %v590 = vshrl.u32 %v589, 7
        %v591 = vsub.s32 %v588, %v590
        %v592 = vrot.slane %v520, %v591
        %vm601 = vcmask 1041408
        %v602 = vsel %vm601, %v543, 0.0
        %v603 = vrot.slane %v602, 4
        %v604 = vadd.f32 %v602, %v603
        %v605 = vrot.slane %v604, 2
        %v606 = vadd.f32 %v604, %v605
        %v607 = vrot.slane %v606, 1
        %v608 = vadd.f32 %v606, %v607
        %v609 = vsel %vm601, %v550, 0.0
        %v610 = vrot.slane %v609, 4
        %v611 = vadd.f32 %v609, %v610
        %v612 = vrot.slane %v611, 2
        %v613 = vadd.f32 %v611, %v612
        %v614 = vrot.slane %v613, 1
        %v615 = vadd.f32 %v613, %v614
        %v616 = vsel %vm601, %v557, 0.0
        %v617 = vrot.slane %v616, 4
        %v618 = vadd.f32 %v616, %v617
        %v619 = vrot.slane %v618, 2
        %v620 = vadd.f32 %v618, %v619
        %v621 = vrot.slane %v620, 1
        %v622 = vadd.f32 %v620, %v621
        %v623 = vsel %vm601, %v564, 0.0
        %v624 = vrot.slane %v623, 4
        %v625 = vadd.f32 %v623, %v624
        %v626 = vrot.slane %v625, 2
        %v627 = vadd.f32 %v625, %v626
        %v628 = vrot.slane %v627, 1
        %v629 = vadd.f32 %v627, %v628
        %v630 = vsel %vm601, %v571, 0.0
        %v631 = vrot.slane %v630, 4
        %v632 = vadd.f32 %v630, %v631
        %v633 = vrot.slane %v632, 2
        %v634 = vadd.f32 %v632, %v633
        %v635 = vrot.slane %v634, 1
        %v636 = vadd.f32 %v634, %v635
        %v637 = vsel %vm601, %v578, 0.0
        %v638 = vrot.slane %v637, 4
        %v639 = vadd.f32 %v637, %v638
        %v640 = vrot.slane %v639, 2
        %v641 = vadd.f32 %v639, %v640
        %v642 = vrot.slane %v641, 1
        %v643 = vadd.f32 %v641, %v642
        %v644 = vsel %vm601, %v585, 0.0
        %v645 = vrot.slane %v644, 4
        %v646 = vadd.f32 %v644, %v645
        %v647 = vrot.slane %v646, 2
        %v648 = vadd.f32 %v646, %v647
        %v649 = vrot.slane %v648, 1
        %v650 = vadd.f32 %v648, %v649
        %v651 = vsel %vm601, %v592, 0.0
        %v652 = vrot.slane %v651, 4
        %v653 = vadd.f32 %v651, %v652
        %v654 = vrot.slane %v653, 2
        %v655 = vadd.f32 %v653, %v654
        %v656 = vrot.slane %v655, 1
        %v657 = vadd.f32 %v655, %v656
        %v661 = vunpack.c.l.s4 269488144
        %v662 = vunpack.c.0.s8 %v661
        %v663 = vlaneseq
        %v664 = vshrl.u32 %v663, 7
        %v665 = vsub.s32 %v662, %v664
        %v666 = vrot.slane %v530, %v665
        %v668 = vunpack.c.l.s4 842150450
        %v669 = vunpack.c.0.s8 %v668
        %v670 = vlaneseq
        %v671 = vshrl.u32 %v670, 7
        %v672 = vsub.s32 %v669, %v671
        %v673 = vrot.slane %v530, %v672
        %v675 = vunpack.c.l.s4 1414812756
        %v676 = vunpack.c.0.s8 %v675
        %v677 = vlaneseq
        %v678 = vshrl.u32 %v677, 7
        %v679 = vsub.s32 %v676, %v678
        %v680 = vrot.slane %v530, %v679
        %v682 = vunpack.c.l.s4 1987475062
        %v683 = vunpack.c.0.s8 %v682
        %v684 = vlaneseq
        %v685 = vshrl.u32 %v684, 7
        %v686 = vsub.s32 %v683, %v685
        %v687 = vrot.slane %v530, %v686
        %v689 = vunpack.c.l.s4 269488144
        %v690 = vunpack.c.0.s8 %v689
        %v691 = vlaneseq
        %v692 = vshrl.u32 %v691, 7
        %v693 = vsub.s32 %v690, %v692
        %v694 = vrot.slane %v534, %v693
        %v696 = vunpack.c.l.s4 842150450
        %v697 = vunpack.c.0.s8 %v696
        %v698 = vlaneseq
        %v699 = vshrl.u32 %v698, 7
        %v700 = vsub.s32 %v697, %v699
        %v701 = vrot.slane %v534, %v700
        %v703 = vunpack.c.l.s4 1414812756
        %v704 = vunpack.c.0.s8 %v703
        %v705 = vlaneseq
        %v706 = vshrl.u32 %v705, 7
        %v707 = vsub.s32 %v704, %v706
        %v708 = vrot.slane %v534, %v707
        %v710 = vunpack.c.l.s4 1987475062
        %v711 = vunpack.c.0.s8 %v710
        %v712 = vlaneseq
        %v713 = vshrl.u32 %v712, 7
        %v714 = vsub.s32 %v711, %v713
        %v715 = vrot.slane %v534, %v714
        %v724 = vsel %vm601, %v666, 0.0
        %v725 = vrot.slane %v724, 4
        %v726 = vadd.f32 %v724, %v725
        %v727 = vrot.slane %v726, 2
        %v728 = vadd.f32 %v726, %v727
        %v729 = vrot.slane %v728, 1
        %v730 = vadd.f32 %v728, %v729
        %v731 = vsel %vm601, %v673, 0.0
        %v732 = vrot.slane %v731, 4
        %v733 = vadd.f32 %v731, %v732
        %v734 = vrot.slane %v733, 2
        %v735 = vadd.f32 %v733, %v734
        %v736 = vrot.slane %v735, 1
        %v737 = vadd.f32 %v735, %v736
        %v738 = vsel %vm601, %v680, 0.0
        %v739 = vrot.slane %v738, 4
        %v740 = vadd.f32 %v738, %v739
        %v741 = vrot.slane %v740, 2
        %v742 = vadd.f32 %v740, %v741
        %v743 = vrot.slane %v742, 1
        %v744 = vadd.f32 %v742, %v743
        %v745 = vsel %vm601, %v687, 0.0
        %v746 = vrot.slane %v745, 4
        %v747 = vadd.f32 %v745, %v746
        %v748 = vrot.slane %v747, 2
        %v749 = vadd.f32 %v747, %v748
        %v750 = vrot.slane %v749, 1
        %v751 = vadd.f32 %v749, %v750
        %v752 = vsel %vm601, %v694, 0.0
        %v753 = vrot.slane %v752, 4
        %v754 = vadd.f32 %v752, %v753
        %v755 = vrot.slane %v754, 2
        %v756 = vadd.f32 %v754, %v755
        %v757 = vrot.slane %v756, 1
        %v758 = vadd.f32 %v756, %v757
        %v759 = vsel %vm601, %v701, 0.0
        %v760 = vrot.slane %v759, 4
        %v761 = vadd.f32 %v759, %v760
        %v762 = vrot.slane %v761, 2
        %v763 = vadd.f32 %v761, %v762
        %v764 = vrot.slane %v763, 1
        %v765 = vadd.f32 %v763, %v764
        %v766 = vsel %vm601, %v708, 0.0
        %v767 = vrot.slane %v766, 4
        %v768 = vadd.f32 %v766, %v767
        %v769 = vrot.slane %v768, 2
        %v770 = vadd.f32 %v768, %v769
        %v771 = vrot.slane %v770, 1
        %v772 = vadd.f32 %v770, %v771
        %v773 = vsel %vm601, %v715, 0.0
        %v774 = vrot.slane %v773, 4
        %v775 = vadd.f32 %v773, %v774
        %v776 = vrot.slane %v775, 2
        %v777 = vadd.f32 %v775, %v776
        %v778 = vrot.slane %v777, 1
        %v779 = vadd.f32 %v777, %v778
        %v780 = vmul.f32 %v608, 0.001953125
        %v781 = vmul.f32 %v615, 0.001953125
        %v782 = vmul.f32 %v622, 0.001953125
        %v783 = vmul.f32 %v629, 0.001953125
        %v784 = vmul.f32 %v636, 0.001953125
        %v785 = vmul.f32 %v643, 0.001953125
        %v786 = vmul.f32 %v650, 0.001953125
        %v787 = vmul.f32 %v657, 0.001953125
        %v788 = vmul.f32 %v730, 0.001953125
        %v789 = vmul.f32 %v737, 0.001953125
        %v790 = vmul.f32 %v744, 0.001953125
        %v791 = vmul.f32 %v751, 0.001953125
        %v792 = vmul.f32 %v758, 0.001953125
        %v793 = vmul.f32 %v765, 0.001953125
        %v794 = vmul.f32 %v772, 0.001953125
        %v795 = vmul.f32 %v779, 0.001953125
        %v796 = vmul.f32 %v780, %v780
        %v797 = vmul.f32 %v781, %v781
        %v798 = vmul.f32 %v782, %v782
        %v799 = vmul.f32 %v783, %v783
        %v800 = vmul.f32 %v784, %v784
        %v801 = vmul.f32 %v785, %v785
        %v802 = vmul.f32 %v786, %v786
        %v803 = vmul.f32 %v787, %v787
        %v804 = vsub.f32 %v788, %v796
        %v805 = vsub.f32 %v789, %v797
        %v806 = vsub.f32 %v790, %v798
        %v807 = vsub.f32 %v791, %v799
        %v808 = vsub.f32 %v792, %v800
        %v809 = vsub.f32 %v793, %v801
        %v810 = vsub.f32 %v794, %v802
        %v811 = vsub.f32 %v795, %v803
        %v812 = vmax.f32 %v804, 0.0
        %v813 = vmax.f32 %v805, 0.0
        %v814 = vmax.f32 %v806, 0.0
        %v815 = vmax.f32 %v807, 0.0
        %v816 = vmax.f32 %v808, 0.0
        %v817 = vmax.f32 %v809, 0.0
        %v818 = vmax.f32 %v810, 0.0
        %v819 = vmax.f32 %v811, 0.0
        %v820 = vadd.f32 %v812, 1e-05
        %v821 = vadd.f32 %v813, 1e-05
        %v822 = vadd.f32 %v814, 1e-05
        %v823 = vadd.f32 %v815, 1e-05
        %v824 = vadd.f32 %v816, 1e-05
        %v825 = vadd.f32 %v817, 1e-05
        %v826 = vadd.f32 %v818, 1e-05
        %v827 = vadd.f32 %v819, 1e-05
        %v828 = vrsqrt.pop %v820
        %v829 = vrsqrt.pop %v821
        %v830 = vrsqrt.pop %v822
        %v831 = vrsqrt.pop %v823
        %v832 = vrsqrt.pop %v824
        %v833 = vrsqrt.pop %v825
        %v834 = vrsqrt.pop %v826
        %v835 = vrsqrt.pop %v827
        %v836 = vld [vmem:[%s3] sm:$0xff]
        %v837 = vld [vmem:[%s3 + $0x8] sm:$0xff]
        %v846 = vcombine.low %v828, %v829
        %v847 = vcombine.low %v830, %v831
        %v849 = vunpack.c.l.s4 1983009808
        %v850 = vunpack.c.0.s8 %v849
        %v851 = vlaneseq
        %v852 = vshrl.u32 %v851, 7
        %v853 = vsub.s32 %v850, %v852
        %v854 = vrot.slane %v846, %v853
        %v856 = vunpack.c.l.s4 1983009808
        %v857 = vunpack.c.0.s8 %v856
        %v858 = vlaneseq
        %v859 = vshrl.u32 %v858, 7
        %v860 = vsub.s32 %v857, %v859
        %v861 = vrot.slane %v847, %v860
        %v862 = vcombine.low %v854, %v861
        %v863 = vcombine.low %v832, %v833
        %v864 = vcombine.low %v834, %v835
        %v866 = vunpack.c.l.s4 1983009808
        %v867 = vunpack.c.0.s8 %v866
        %v868 = vlaneseq
        %v869 = vshrl.u32 %v868, 7
        %v870 = vsub.s32 %v867, %v869
        %v871 = vrot.slane %v863, %v870
        %v873 = vunpack.c.l.s4 1983009808
        %v874 = vunpack.c.0.s8 %v873
        %v875 = vlaneseq
        %v876 = vshrl.u32 %v875, 7
        %v877 = vsub.s32 %v874, %v876
        %v878 = vrot.slane %v864, %v877
        %v879 = vcombine.low %v871, %v878
        %v882 = vmul.f32 %v836, %v862
        %v883 = vmul.f32 %v837, %v879
        %v884 = vld [vmem:[%s4] sm:$0xff]
        %v885 = vld [vmem:[%s4 + $0x8] sm:$0xff]
        %v888 = vcombine.high %v882, %v882
        %v890 = vunpack.c.l.s4 1983009808
        %v891 = vunpack.c.0.s8 %v890
        %v892 = vlaneseq
        %v893 = vshrl.u32 %v892, 7
        %v894 = vsub.s32 %v891, %v893
        %v895 = vrot.slane %v882, %v894
        %v897 = vunpack.c.l.s4 1983009808
        %v898 = vunpack.c.0.s8 %v897
        %v899 = vlaneseq
        %v900 = vshrl.u32 %v899, 7
        %v901 = vsub.s32 %v898, %v900
        %v902 = vrot.slane %v888, %v901
        %v903 = vcombine.high %v895, %v895
        %v904 = vcombine.high %v902, %v902
        %v905 = vcombine.high %v883, %v883
        %v907 = vunpack.c.l.s4 1983009808
        %v908 = vunpack.c.0.s8 %v907
        %v909 = vlaneseq
        %v910 = vshrl.u32 %v909, 7
        %v911 = vsub.s32 %v908, %v910
        %v912 = vrot.slane %v883, %v911
        %v914 = vunpack.c.l.s4 1983009808
        %v915 = vunpack.c.0.s8 %v914
        %v916 = vlaneseq
        %v917 = vshrl.u32 %v916, 7
        %v918 = vsub.s32 %v915, %v917
        %v919 = vrot.slane %v905, %v918
        %v920 = vcombine.high %v912, %v912
        %v921 = vcombine.high %v919, %v919
        %v930 = vmul.f32 %v780, %v895
        %v931 = vmul.f32 %v781, %v903
        %v932 = vmul.f32 %v782, %v902
        %v933 = vmul.f32 %v783, %v904
        %v934 = vmul.f32 %v784, %v912
        %v935 = vmul.f32 %v785, %v920
        %v936 = vmul.f32 %v786, %v919
        %v937 = vmul.f32 %v787, %v921
        %v946 = vcombine.low %v930, %v931
        %v947 = vcombine.low %v932, %v933
        %v949 = vunpack.c.l.s4 1983009808
        %v950 = vunpack.c.0.s8 %v949
        %v951 = vlaneseq
        %v952 = vshrl.u32 %v951, 7
        %v953 = vsub.s32 %v950, %v952
        %v954 = vrot.slane %v946, %v953
        %v956 = vunpack.c.l.s4 1983009808
        %v957 = vunpack.c.0.s8 %v956
        %v958 = vlaneseq
        %v959 = vshrl.u32 %v958, 7
        %v960 = vsub.s32 %v957, %v959
        %v961 = vrot.slane %v947, %v960
        %v962 = vcombine.low %v954, %v961
        %v963 = vcombine.low %v934, %v935
        %v964 = vcombine.low %v936, %v937
        %v966 = vunpack.c.l.s4 1983009808
        %v967 = vunpack.c.0.s8 %v966
        %v968 = vlaneseq
        %v969 = vshrl.u32 %v968, 7
        %v970 = vsub.s32 %v967, %v969
        %v971 = vrot.slane %v963, %v970
        %v973 = vunpack.c.l.s4 1983009808
        %v974 = vunpack.c.0.s8 %v973
        %v975 = vlaneseq
        %v976 = vshrl.u32 %v975, 7
        %v977 = vsub.s32 %v974, %v976
        %v978 = vrot.slane %v964, %v977
        %v979 = vcombine.low %v971, %v978
        %v982 = vsub.f32 %v884, %v962
        %v983 = vsub.f32 %v885, %v979
        %984 = vset.pattern.permute.xlu0 0
        %985 = vperm.xlu0 %984, %v882
        %v986 = vpop.permute.xlu0 %985
        %988 = vset.pattern.permute.xlu0 0
        %989 = vperm.xlu0 %988, %v883
        %v990 = vpop.permute.xlu0 %989
        %v992 = vmul.f32 %v441, %v986
        %v993 = vmul.f32 %v443, %v986
        %v994 = vmul.f32 %v484, %v986
        %v995 = vmul.f32 %v445, %v990
        %v996 = vmul.f32 %v447, %v990
        %v997 = vmul.f32 %v487, %v990
        %999 = vset.pattern.permute.xlu0 0
        %1000 = vperm.xlu0 %999, %v982
        %v1001 = vpop.permute.xlu0 %1000
        %1004 = vset.pattern.permute.xlu0 0
        %1005 = vperm.xlu0 %1004, %v983
        %v1006 = vpop.permute.xlu0 %1005
        %v1008 = vadd.f32 %v992, %v1001
        %v1009 = vadd.f32 %v993, %v1001
        %v1010 = vadd.f32 %v994, %v1001
        %v1011 = vadd.f32 %v995, %v1006
        %v1012 = vadd.f32 %v996, %v1006
        %v1013 = vadd.f32 %v997, %v1006
        %v1014 = vmax.f32 %v1008, 0.0
        %v1015 = vmax.f32 %v1009, 0.0
        %v1016 = vmax.f32 %v1010, 0.0
        %v1017 = vmax.f32 %v1011, 0.0
        %v1018 = vmax.f32 %v1012, 0.0
        %v1019 = vmax.f32 %v1013, 0.0
        %1020 = vst [vmem:[%s240] sm:$0xff] %v1014
        %1021 = vst [vmem:[%s240 + $0x8] sm:$0xff] %v1015
        %1022 = vst [vmem:[%s240 + $0x10] sm:$0xff] %v1016
        %1023 = vst [vmem:[%s240 + $0x18] sm:$0xff] %v1017
        %1024 = vst [vmem:[%s240 + $0x20] sm:$0xff] %v1018
        %1025 = vst [vmem:[%s240 + $0x28] sm:$0xff] %v1019
        %s1026 = sand.u32 %s140, 1
        %s1027 = scalar_lea.sflag [#allocation4], %s1026
        %s1028 = sand.u32 %s140, 1
        %s1029 = smul.addr %s1028, 48
        %s1030 = scalar_lea.vmem [#allocation5], %s1029
        // Predicated region
        $region45: #{tpu_custom_call.1} parent=39 // pred_check
          %p1031 = pneg %p150
        $region46: #{tpu_custom_call.1} parent=39 // pred_check_branch
          %1033 = sbr.rel (%p1031) target = $region48
        $region47: #{tpu_custom_call.1} parent=39 // pred_region
          %s1035 = ssub.s32 768, 768
          %1036 = vsyncadd %s1027, %s1035
          %s1037 = smul.addr %s22, 6
          %s1038 = smul.addr %s1037, 128
          %s1039 = scalar_lea.hbm %s5, %s1038
          %s1040 = sshll.u32 %s1030, 4
          %s1041 = int_to_ptr.vmem [resolvable:$true] %s1040
          %1046 = dma.vmem_to_hbm [thread:$0]  %s1041, 768, %s1039, %s1027, 384, 384, 24
        $region48: #{tpu_custom_call.1} parent=39 // pred_fallthru
          _
      $region40: #{tpu_custom_call.1} parent=5 // pred_fallthru
        _
      %p1047 = scmp.le.s32.totalorder 2, %s17
      // Predicated region
      $region49: #{tpu_custom_call.1} parent=5 // pred_check
        %p1048 = pneg %p1047
      $region50: #{tpu_custom_call.1} parent=5 // pred_check_branch
        %1050 = sbr.rel (%p1048) target = $region52
      $region51: #{tpu_custom_call.1} parent=5 // pred_region
        %s1051 = ssub.s32 %s17, 2
        // Predicated region
        $region53: #{tpu_custom_call.1} parent=51 // pred_check
          %p1052 = pneg %p156
        $region54: #{tpu_custom_call.1} parent=51 // pred_check_branch
          %1054 = sbr.rel (%p1052) target = $region56
        $region55: #{tpu_custom_call.1} parent=51 // pred_region
          %s1055 = sand.u32 %s141, 1
          %s1056 = scalar_lea.sflag [#allocation4], %s1055
          %s1057 = sand.u32 %s141, 1
          %s1058 = smul.addr %s1057, 48
          %s1059 = scalar_lea.vmem [#allocation5], %s1058
          %1060 = dma.done %s1056, 768
        $region56: #{tpu_custom_call.1} parent=51 // pred_fallthru
          _
      $region52: #{tpu_custom_call.1} parent=5 // pred_fallthru
        _
    $region6: #{tpu_custom_call.1} parent=1 // loop_footer
      %s21 = sadd.s32 1, %s17
    $region7: #{tpu_custom_call.1} parent=1 // loop_footer_branch
      %16 = sbr.rel target = $region3
    $region8: #{tpu_custom_call.1} parent=1 // loop_exit
      _
    %1061 = vsyncpa [#allocation3], 1
    %s1062 = scalar_lea.sflag [#allocation3], 1
    %1063 = vsyncpa %s1062, 1
    %1064 = vsyncpa [#allocation4], 1
    %s1065 = scalar_lea.sflag [#allocation4], 1
    %1066 = vsyncpa %s1065, 1

</llo_original>
